<compile_context>
chip_gen: v6e
topology: v6e:2x2x1
jax: 0.10.0
libtpu: 0.0.40
codegen_flags: <defaults>
</compile_context>

<pallas_src>
import jax
import jax.numpy as jnp
from jax.experimental import pallas as pl
from jax.experimental.pallas import tpu as pltpu


def _glu_kernel(x_ref, wv_ref, wg_ref, bv_ref, bg_ref, o_ref):
    # x_ref : (tm, dim_in)  input dtype (cast to bf16 here, not in the wrapper)
    # wv_ref: (dim_in, tn)  bf16  value half of the projection (pre-transposed)
    # wg_ref: (dim_in, tn)  bf16  gate  half of the projection (pre-transposed)
    # bv_ref/bg_ref: (1, tn) f32
    # o_ref : (tm, tn)
    x = x_ref[...].astype(jnp.bfloat16)
    val = jnp.dot(x, wv_ref[...], preferred_element_type=jnp.float32) + bv_ref[...]
    gate = jnp.dot(x, wg_ref[...], preferred_element_type=jnp.float32) + bg_ref[...]
    # SiLU: g * sigmoid(g) = g / (1 + exp(-g)); divide routed to the EUP.
    gate_act = gate * pl.reciprocal(1.0 + jnp.exp(-gate), approx=True)
    o_ref[...] = (val * gate_act).astype(o_ref.dtype)


def _round_up(x, m):
    return (x + m - 1) // m * m


def prepare_glu_params(weight, bias, dim_out):
    """One-time parameter preparation (hoisted out of the per-call path).

    weight: (2*dim_out, dim_in)  -- PyTorch nn.Linear(dim_in, 2*dim_out) layout
    bias:   (2*dim_out,)
    Returns (w_val, w_gate, b_val, b_gate) with the output axis padded to a
    multiple of 128 and weights pre-transposed + cast to bf16.
    """
    dim_out_pad = _round_up(dim_out, 128)
    pad = dim_out_pad - dim_out

    w_val = weight[:dim_out, :].T.astype(jnp.bfloat16)    # (dim_in, dim_out)
    w_gate = weight[dim_out:, :].T.astype(jnp.bfloat16)   # (dim_in, dim_out)
    b_val = bias[:dim_out].astype(jnp.float32)
    b_gate = bias[dim_out:].astype(jnp.float32)

    if pad:
        w_val = jnp.pad(w_val, ((0, 0), (0, pad)))
        w_gate = jnp.pad(w_gate, ((0, 0), (0, pad)))
        b_val = jnp.pad(b_val, (0, pad))
        b_gate = jnp.pad(b_gate, (0, pad))

    return w_val, w_gate, b_val.reshape(1, -1), b_gate.reshape(1, -1)


def _vmem_estimate(tm, tn, dim_in, x_itemsize, out_itemsize):
    x_blk = tm * dim_in * x_itemsize
    w_blk = 2 * dim_in * tn * 2          # both halves, bf16
    b_blk = 2 * tn * 4
    o_blk = tm * tn * out_itemsize
    # double-buffered blocks + in-kernel temporaries (f32 val/gate/act + bf16 x)
    scratch = 3 * tm * tn * 4 + tm * dim_in * 2
    return 2 * (x_blk + w_blk + b_blk + o_blk) + scratch


def glu_forward(x, w_val, w_gate, b_val, b_gate, *, dim_out,
                tm=256, out_dtype=None):
    """GLU forward with pre-prepared params (see prepare_glu_params).

    x: (B, S, dim_in) -> (B, S, dim_out)
    """
    B, S, dim_in = x.shape
    M = B * S
    out_dtype = x.dtype if out_dtype is None else out_dtype
    out_itemsize = jnp.dtype(out_dtype).itemsize
    x_itemsize = jnp.dtype(x.dtype).itemsize
    dim_out_pad = w_val.shape[1]

    x2d = x.reshape(M, dim_in)

    # ---- tile selection -----------------------------------------------------
    tm = min(tm, _round_up(M, 8))                     # small inputs: small tile
    tn = 256 if dim_out_pad % 256 == 0 else 128       # always a 128 multiple

    budget = 44 * 1024 * 1024
    while _vmem_estimate(tm, tn, dim_in, x_itemsize, out_itemsize) > budget:
        if tn > 128:
            tn //= 2
        elif tm > 64:
            tm //= 2
        else:
            break
    est = _vmem_estimate(tm, tn, dim_in, x_itemsize, out_itemsize)
    vmem_limit = int(min(56 * 1024 * 1024, max(32 * 1024 * 1024, est * 1.3)))

    n_i = pl.cdiv(M, tm)          # ragged last row-block handled by Pallas
    n_j = dim_out_pad // tn

    # ---- grid ordering: minimize HBM streaming ------------------------------
    w_bytes = 2 * dim_in * dim_out_pad * 2            # both halves, bf16
    x_bytes = M * dim_in * x_itemsize
    bytes_j_outer = w_bytes + n_j * x_bytes            # weights DMA'd once
    bytes_i_outer = n_i * w_bytes + x_bytes            # x DMA'd once
    weights_resident = bytes_j_outer <= bytes_i_outer

    if weights_resident:
        grid = (n_j, n_i)
        x_map = lambda j, i: (i, 0)
        w_map = lambda j, i: (0, j)
        o_map = lambda j, i: (i, j)
        stream_bytes = bytes_j_outer
    else:
        grid = (n_i, n_j)
        x_map = lambda i, j: (i, 0)
        w_map = lambda i, j: (0, j)
        o_map = lambda i, j: (i, j)
        stream_bytes = bytes_i_outer

    cost = pl.CostEstimate(
        flops=2 * M * dim_in * 2 * dim_out_pad,
        transcendentals=M * dim_out_pad,               # exp in the sigmoid gate
        bytes_accessed=int(stream_bytes
                           + 2 * dim_out_pad * 4
                           + M * dim_out_pad * out_itemsize),
    )

    out2d = pl.pallas_call(
        _glu_kernel,
        out_shape=jax.ShapeDtypeStruct((M, dim_out_pad), out_dtype),
        grid_spec=pltpu.PrefetchScalarGridSpec(
            num_scalar_prefetch=0,
            grid=grid,
            in_specs=[
                pl.BlockSpec((tm, dim_in), x_map),
                pl.BlockSpec((dim_in, tn), w_map),
                pl.BlockSpec((dim_in, tn), w_map),
                pl.BlockSpec((1, tn), w_map),
                pl.BlockSpec((1, tn), w_map),
            ],
            out_specs=pl.BlockSpec((tm, tn), o_map),
        ),
        compiler_params=pltpu.CompilerParams(
            dimension_semantics=("parallel", "parallel"),
            vmem_limit_bytes=vmem_limit,
        ),
        cost_estimate=cost,
    )(x2d, w_val, w_gate, b_val, b_gate)

    if dim_out_pad != dim_out:
        out2d = out2d[:, :dim_out]
    return out2d.reshape(B, S, dim_out)


def glu_reference(x, weight, bias, *, dim_out):
    # bf16-matched reference (same matmul precision as the kernel path).
    B, S, dim_in = x.shape
    M = B * S
    xb = x.reshape(M, dim_in).astype(jnp.bfloat16)
    wb = weight.astype(jnp.bfloat16)
    y = jnp.dot(xb, wb.T, preferred_element_type=jnp.float32) + bias
    val, gate = y[:, :dim_out], y[:, dim_out:]
    out = (val * (gate * jax.nn.sigmoid(gate))).astype(x.dtype)
    return out.reshape(B, S, dim_out)


if __name__ == "__main__":
    B, S = 2, 8
    dim_in, dim_out = 128, 128

    key = jax.random.PRNGKey(0)
    kx, kw, kb = jax.random.split(key, 3)

    x = jax.random.normal(kx, (B, S, dim_in), dtype=jnp.float32)
    # nn.Linear(dim_in, 2*dim_out): weight (2*dim_out, dim_in), bias (2*dim_out,)
    weight = jax.random.normal(kw, (2 * dim_out, dim_in), dtype=jnp.float32) * 0.02
    bias = jax.random.normal(kb, (2 * dim_out,), dtype=jnp.float32) * 0.01

    # One-time parameter prep (would live at model init / load time).
    w_val, w_gate, b_val, b_gate = prepare_glu_params(weight, bias, dim_out)

    out = glu_forward(x, w_val, w_gate, b_val, b_gate, dim_out=dim_out)
    out = jax.block_until_ready(out)

    ref = glu_reference(x, weight, bias, dim_out=dim_out)
    assert out.shape == (B, S, dim_out)
    assert jnp.allclose(out, ref, atol=2e-3, rtol=2e-3), "mismatch vs reference"

    print("KERNEL_OK")
</pallas_src>

<mosaic_0001>
module attributes {stable_mosaic.version = 11 : i64} {
  func.func @_glu_kernel(%arg0: i32, %arg1: i32, %arg2: memref<16x128xf32, #tpu.memory_space<vmem>>, %arg3: memref<128x128xbf16, #tpu.memory_space<vmem>>, %arg4: memref<128x128xbf16, #tpu.memory_space<vmem>>, %arg5: memref<1x128xf32, #tpu.memory_space<vmem>>, %arg6: memref<1x128xf32, #tpu.memory_space<vmem>>, %arg7: memref<16x128xf32, #tpu.memory_space<vmem>>) attributes {dimension_semantics = [#tpu.dimension_semantics<parallel>, #tpu.dimension_semantics<parallel>], iteration_bounds = array<i64: 1, 1>, scalar_prefetch = 0 : i64, scratch_operands = 0 : i64, tpu.core_type = #tpu.core_type<tc>, window_params = [{transform_indices = @transform_0, window_bounds = array<i64: 16, 128>}, {transform_indices = @transform_1, window_bounds = array<i64: 128, 128>}, {transform_indices = @transform_2, window_bounds = array<i64: 128, 128>}, {transform_indices = @transform_3, window_bounds = array<i64: 1, 128>}, {transform_indices = @transform_4, window_bounds = array<i64: 1, 128>}, {transform_indices = @transform_5, window_bounds = array<i64: 16, 128>}]} {
    %c0 = arith.constant 0 : index
    %c0_0 = arith.constant 0 : index
    %0 = vector.load %arg2[%c0, %c0_0] : memref<16x128xf32, #tpu.memory_space<vmem>>, vector<16x128xf32>
    %1 = arith.truncf %0 : vector<16x128xf32> to vector<16x128xbf16>
    %c0_1 = arith.constant 0 : index
    %c0_2 = arith.constant 0 : index
    %2 = vector.load %arg3[%c0_1, %c0_2] : memref<128x128xbf16, #tpu.memory_space<vmem>>, vector<128x128xbf16>
    %cst = arith.constant dense<0.000000e+00> : vector<16x128xf32>
    %3 = tpu.matmul %1, %2, %cst {dimension_numbers = #tpu.dot_dimension_numbers<[1], [0], [0], [1], [0, 0, 1, 1], [], []>} : vector<16x128xbf16>, vector<128x128xbf16>, vector<16x128xf32> -> vector<16x128xf32>
    %c0_3 = arith.constant 0 : index
    %c0_4 = arith.constant 0 : index
    %4 = vector.load %arg5[%c0_3, %c0_4] : memref<1x128xf32, #tpu.memory_space<vmem>>, vector<1x128xf32>
    %5 = vector.broadcast %4 : vector<1x128xf32> to vector<16x128xf32>
    %6 = arith.addf %3, %5 : vector<16x128xf32>
    %c0_5 = arith.constant 0 : index
    %c0_6 = arith.constant 0 : index
    %7 = vector.load %arg4[%c0_5, %c0_6] : memref<128x128xbf16, #tpu.memory_space<vmem>>, vector<128x128xbf16>
    %cst_7 = arith.constant dense<0.000000e+00> : vector<16x128xf32>
    %8 = tpu.matmul %1, %7, %cst_7 {dimension_numbers = #tpu.dot_dimension_numbers<[1], [0], [0], [1], [0, 0, 1, 1], [], []>} : vector<16x128xbf16>, vector<128x128xbf16>, vector<16x128xf32> -> vector<16x128xf32>
    %c0_8 = arith.constant 0 : index
    %c0_9 = arith.constant 0 : index
    %9 = vector.load %arg6[%c0_8, %c0_9] : memref<1x128xf32, #tpu.memory_space<vmem>>, vector<1x128xf32>
    %10 = vector.broadcast %9 : vector<1x128xf32> to vector<16x128xf32>
    %11 = arith.addf %8, %10 : vector<16x128xf32>
    %cst_10 = arith.constant 0.000000e+00 : f32
    %12 = vector.broadcast %cst_10 : f32 to vector<16x128xf32>
    %13 = arith.subf %12, %11 : vector<16x128xf32>
    %14 = math.exp %13 : vector<16x128xf32>
    %cst_11 = arith.constant 1.000000e+00 : f32
    %15 = vector.broadcast %cst_11 : f32 to vector<16x128xf32>
    %16 = arith.addf %15, %14 : vector<16x128xf32>
    %17 = tpu.reciprocal %16 {approx = true} : vector<16x128xf32> -> vector<16x128xf32>
    %18 = arith.mulf %11, %17 : vector<16x128xf32>
    %19 = arith.mulf %6, %18 : vector<16x128xf32>
    %c0_12 = arith.constant 0 : index
    %c0_13 = arith.constant 0 : index
    %20 = vector.load %arg7[%c0_12, %c0_13] : memref<16x128xf32, #tpu.memory_space<vmem>>, vector<16x128xf32>
    tpu.vector_store %arg7[%c0_12, %c0_13], %19 {strides = array<i32>} : memref<16x128xf32, #tpu.memory_space<vmem>>, vector<16x128xf32>,
    return
  }
  func.func @transform_0(%arg0: i32, %arg1: i32) -> (i32, i32) {
    %c0_i32 = arith.constant 0 : i32
    %c0_i32_0 = arith.constant 0 : i32
    return %arg1, %c0_i32 : i32, i32
  }
  func.func @transform_1(%arg0: i32, %arg1: i32) -> (i32, i32) {
    %c0_i32 = arith.constant 0 : i32
    %c0_i32_0 = arith.constant 0 : i32
    return %c0_i32, %arg0 : i32, i32
  }
  func.func @transform_2(%arg0: i32, %arg1: i32) -> (i32, i32) {
    %c0_i32 = arith.constant 0 : i32
    %c0_i32_0 = arith.constant 0 : i32
    return %c0_i32, %arg0 : i32, i32
  }
  func.func @transform_3(%arg0: i32, %arg1: i32) -> (i32, i32) {
    %c0_i32 = arith.constant 0 : i32
    %c0_i32_0 = arith.constant 0 : i32
    return %c0_i32, %arg0 : i32, i32
  }
  func.func @transform_4(%arg0: i32, %arg1: i32) -> (i32, i32) {
    %c0_i32 = arith.constant 0 : i32
    %c0_i32_0 = arith.constant 0 : i32
    return %c0_i32, %arg0 : i32, i32
  }
  func.func @transform_5(%arg0: i32, %arg1: i32) -> (i32, i32) {
    %c0_i32 = arith.constant 0 : i32
    return %arg1, %arg0 : i32, i32
  }
}

</mosaic_0001>

<llo_original>
// kernel: tpu_custom_call.1
$region0: #{tpu_custom_call.1}
  #allocation0 [shape = 'u32[]', space=smem, size = 0x4, offset = 0x4, fixed_abs, tag = 'smem constant byte address 0x4 - core index']
  #allocation1 [shape = 'u32[144,128]{1,0:T(1,128)}', space=vmem, size = 0x12000, scoped, tag = 'internal scratch']
  %s0 = inlined_call_operand.hbm [shape: f32[16,128], index: 0, kind: input, shape index: {}]
  %s1 = inlined_call_operand.hbm [shape: bf16[128,128], index: 1, kind: input, shape index: {}]
  %s2 = inlined_call_operand.hbm [shape: bf16[128,128], index: 2, kind: input, shape index: {}]
  %s3 = inlined_call_operand.vmem [shape: f32[1,128], index: 3, kind: input, shape index: {}]
  %s4 = inlined_call_operand.vmem [shape: f32[1,128], index: 4, kind: input, shape index: {}]
  %s5 = inlined_call_operand.hbm [shape: f32[16,128], index: 5, kind: output, shape index: {}]
  %s6 = sld [smem:[#allocation0]]
  $region42: #{tpu_custom_call.1} parent=0
    _
  %s8 = ssub.s32 1, %s6
  %s9 = scalar_select 0, %s8, %s6
  $region1: #{tpu_custom_call.1} parent=0
    #allocation2 [shape = 'u8[8192]{0}', space=vmem, size = 0x2000, scoped, tag = 'input window, operand 0, single buffered']
    #allocation3 [shape = 's32[1]{0}', space=sflag, size = 0x4, scoped, tag = 'scoped memory for tpu_custom_call.1']
    #allocation4 [shape = 's32[1]{0}', space=sflag, size = 0x4, scoped, tag = 'scoped memory for tpu_custom_call.1']
    #allocation5 [shape = 'u8[32768]{0}', space=vmem, size = 0x8000, scoped, tag = 'input window, operand 1, single buffered']
    #allocation6 [shape = 's32[1]{0}', space=sflag, size = 0x4, scoped, tag = 'scoped memory for tpu_custom_call.1']
    #allocation7 [shape = 'u8[32768]{0}', space=vmem, size = 0x8000, scoped, tag = 'input window, operand 2, single buffered']
    #allocation8 [shape = 'u8[8192]{0}', space=vmem, size = 0x2000, scoped, tag = 'output window, operand 0, single buffered']
    %10 = vsyncpa [#allocation3], 0
    %11 = vsyncpa [#allocation6], 0
    %12 = vsyncpa [#allocation4], 0
    // Predicated region
    $region2: #{tpu_custom_call.1} parent=1 // pred_check
      _
    $region3: #{tpu_custom_call.1} parent=1 // pred_check_branch
      %14 = sbr.rel (0) target = $region5
    $region4: #{tpu_custom_call.1} parent=1 // pred_region
      %s16 = ssub.s32 256, 256
      %17 = vsyncadd [#allocation3], %s16
      %s18 = sshll.u32 [#allocation2], 4
      %s19 = int_to_ptr.vmem [resolvable:$true] %s18
      %24 = dma.hbm_to_vmem [thread:$0]  %s0, 256, %s19, [#allocation3], 128, 128, 8
    $region5: #{tpu_custom_call.1} parent=1 // pred_fallthru
      _
    // Predicated region
    $region6: #{tpu_custom_call.1} parent=1 // pred_check
      _
    $region7: #{tpu_custom_call.1} parent=1 // pred_check_branch
      %26 = sbr.rel (0) target = $region9
    $region8: #{tpu_custom_call.1} parent=1 // pred_region
      %s28 = ssub.s32 1024, 1024
      %29 = vsyncadd [#allocation6], %s28
      %s30 = sshll.u32 [#allocation5], 4
      %s31 = int_to_ptr.vmem [resolvable:$true] %s30
      %36 = dma.hbm_to_vmem [thread:$0]  %s1, 1024, %s31, [#allocation6], 64, 64, 4
    $region9: #{tpu_custom_call.1} parent=1 // pred_fallthru
      _
    // Predicated region
    $region10: #{tpu_custom_call.1} parent=1 // pred_check
      _
    $region11: #{tpu_custom_call.1} parent=1 // pred_check_branch
      %38 = sbr.rel (0) target = $region13
    $region12: #{tpu_custom_call.1} parent=1 // pred_region
      %s40 = ssub.s32 1024, 1024
      %41 = vsyncadd [#allocation6], %s40
      %s42 = sshll.u32 [#allocation7], 4
      %s43 = int_to_ptr.vmem [resolvable:$true] %s42
      %48 = dma.hbm_to_vmem [thread:$0]  %s2, 1024, %s43, [#allocation6], 64, 64, 4
    $region13: #{tpu_custom_call.1} parent=1 // pred_fallthru
      _
    // Predicated region
    $region14: #{tpu_custom_call.1} parent=1 // pred_check
      _
    $region15: #{tpu_custom_call.1} parent=1 // pred_check_branch
      %50 = sbr.rel (0) target = $region17
    $region16: #{tpu_custom_call.1} parent=1 // pred_region
      _
    $region17: #{tpu_custom_call.1} parent=1 // pred_fallthru
      _
    // Predicated region
    $region18: #{tpu_custom_call.1} parent=1 // pred_check
      _
    $region19: #{tpu_custom_call.1} parent=1 // pred_check_branch
      %52 = sbr.rel (0) target = $region21
    $region20: #{tpu_custom_call.1} parent=1 // pred_region
      _
    $region21: #{tpu_custom_call.1} parent=1 // pred_fallthru
      _
    // Predicated region
    $region22: #{tpu_custom_call.1} parent=1 // pred_check
      _
    $region23: #{tpu_custom_call.1} parent=1 // pred_check_branch
      %54 = sbr.rel (0) target = $region25
    $region24: #{tpu_custom_call.1} parent=1 // pred_region
      %55 = dma.done [#allocation3], 256
    $region25: #{tpu_custom_call.1} parent=1 // pred_fallthru
      _
    // Predicated region
    $region26: #{tpu_custom_call.1} parent=1 // pred_check
      _
    $region27: #{tpu_custom_call.1} parent=1 // pred_check_branch
      %57 = sbr.rel (0) target = $region29
    $region28: #{tpu_custom_call.1} parent=1 // pred_region
      %58 = dma.done [#allocation6], 1024
    $region29: #{tpu_custom_call.1} parent=1 // pred_fallthru
      _
    // Predicated region
    $region30: #{tpu_custom_call.1} parent=1 // pred_check
      _
    $region31: #{tpu_custom_call.1} parent=1 // pred_check_branch
      %60 = sbr.rel (0) target = $region33
    $region32: #{tpu_custom_call.1} parent=1 // pred_region
      %61 = dma.done [#allocation6], 1024
    $region33: #{tpu_custom_call.1} parent=1 // pred_fallthru
      _
    %v63 = vld [vmem:[#allocation2] sm:$0xff]
    %v64 = vld [vmem:[#allocation2 + $0x8] sm:$0xff]
    %v65 = vpack.c.bf16 %v64, %v63
    %v66 = vld [vmem:[#allocation5] sm:$0xf]
    %v67 = vld [vmem:[#allocation5 + $0x4] sm:$0xf]
    %v68 = vld [vmem:[#allocation5 + $0x8] sm:$0xf]
    %v69 = vld [vmem:[#allocation5 + $0xc] sm:$0xf]
    %v70 = vld [vmem:[#allocation5 + $0x10] sm:$0xf]
    %v71 = vld [vmem:[#allocation5 + $0x14] sm:$0xf]
    %v72 = vld [vmem:[#allocation5 + $0x18] sm:$0xf]
    %v73 = vld [vmem:[#allocation5 + $0x1c] sm:$0xf]
    %v74 = vld [vmem:[#allocation5 + $0x20] sm:$0xf]
    %v75 = vld [vmem:[#allocation5 + $0x24] sm:$0xf]
    %v76 = vld [vmem:[#allocation5 + $0x28] sm:$0xf]
    %v77 = vld [vmem:[#allocation5 + $0x2c] sm:$0xf]
    %v78 = vld [vmem:[#allocation5 + $0x30] sm:$0xf]
    %v79 = vld [vmem:[#allocation5 + $0x34] sm:$0xf]
    %v80 = vld [vmem:[#allocation5 + $0x38] sm:$0xf]
    %v81 = vld [vmem:[#allocation5 + $0x3c] sm:$0xf]
    %v82 = vld [vmem:[%s3] sm:$0x1]
    %v84 = vlaneseq
    %v85 = vshrl.u32 %v84, 7
    %v86 = vsub.s32 0, %v85
    %v87 = vrot.slane %v82, %v86
    %v105 = vunpack.c.l.b16 %v66
    %v106 = vunpack.c.l.b16 %v67
    %v107 = vunpack.c.l.b16 %v68
    %v108 = vunpack.c.l.b16 %v69
    %v109 = vunpack.c.l.b16 %v70
    %v110 = vunpack.c.l.b16 %v71
    %v111 = vunpack.c.l.b16 %v72
    %v112 = vunpack.c.l.b16 %v73
    %v113 = vunpack.c.l.b16 %v74
    %v114 = vunpack.c.l.b16 %v75
    %v115 = vunpack.c.l.b16 %v76
    %v116 = vunpack.c.l.b16 %v77
    %v117 = vunpack.c.l.b16 %v78
    %v118 = vunpack.c.l.b16 %v79
    %v119 = vunpack.c.l.b16 %v80
    %v120 = vunpack.c.l.b16 %v81
    %v121 = vpack.c.b16 %v106, %v105
    %v122 = vpack.c.b16 %v108, %v107
    %v123 = vpack.c.b16 %v110, %v109
    %v124 = vpack.c.b16 %v112, %v111
    %v125 = vpack.c.b16 %v114, %v113
    %v126 = vpack.c.b16 %v116, %v115
    %v127 = vpack.c.b16 %v118, %v117
    %v128 = vpack.c.b16 %v120, %v119
    %137 = vmatprep.subr.bf16.mxu0 0
    %138 = vmatpush1.bf16.msra.mxu0 %v128
    %139 = vmatprep.subr.bf16.mxu0 0
    %140 = vmatpush1.bf16.msra.mxu0 %v127
    %141 = vmatprep.subr.bf16.mxu0 0
    %142 = vmatpush1.bf16.msra.mxu0 %v126
    %143 = vmatprep.subr.bf16.mxu0 0
    %144 = vmatpush1.bf16.msra.mxu0 %v125
    %145 = vmatprep.subr.bf16.mxu0 0
    %146 = vmatpush1.bf16.msra.mxu0 %v124
    %147 = vmatprep.subr.bf16.mxu0 0
    %148 = vmatpush1.bf16.msra.mxu0 %v123
    %149 = vmatprep.subr.bf16.mxu0 0
    %150 = vmatpush1.bf16.msra.mxu0 %v122
    %151 = vmatprep.subr.bf16.mxu0 0
    %152 = vmatpush1.bf16.msra.mxu0 %v121
    %153 = vmatprep.subr.bf16.mxu0 0
    %154 = vmatpush2.bf16.msra.mxu0 0
    %155 = vmatprep.subr.bf16.mxu0 0
    %156 = vmatpush2.bf16.msra.mxu0 0
    %157 = vmatprep.subr.bf16.mxu0 0
    %158 = vmatpush2.bf16.msra.mxu0 0
    %159 = vmatprep.subr.bf16.mxu0 0
    %160 = vmatpush2.bf16.msra.mxu0 0
    %161 = vmatprep.subr.bf16.mxu0 0
    %162 = vmatpush2.bf16.msra.mxu0 0
    %163 = vmatprep.subr.bf16.mxu0 0
    %164 = vmatpush2.bf16.msra.mxu0 0
    %165 = vmatprep.subr.bf16.mxu0 0
    %166 = vmatpush2.bf16.msra.mxu0 0
    %167 = vmatprep.subr.bf16.mxu0 0
    %168 = vmatpush2.bf16.msra.mxu0 0
    %169 = vmatprep.mubr.bf16.mxu0 0
    %170 = vmatmul.mubr.bf16.gmra.mxu0 %v65
    %v171 = vpop.f32.mrf.mxu0
    %v172 = vadd.f32 %v87, %v171
    %v173 = vpop.f32.mrf.mxu0
    %v174 = vpop.f32.mrf.mxu0
    %v175 = vadd.f32 %v87, %v174
    %v176 = vpop.f32.mrf.mxu0
    %177 = vdwg.mxu0
    %v178 = vld [vmem:[#allocation7] sm:$0xf]
    %v179 = vld [vmem:[#allocation7 + $0x4] sm:$0xf]
    %v180 = vld [vmem:[#allocation7 + $0x8] sm:$0xf]
    %v181 = vld [vmem:[#allocation7 + $0xc] sm:$0xf]
    %v182 = vld [vmem:[#allocation7 + $0x10] sm:$0xf]
    %v183 = vld [vmem:[#allocation7 + $0x14] sm:$0xf]
    %v184 = vld [vmem:[#allocation7 + $0x18] sm:$0xf]
    %v185 = vld [vmem:[#allocation7 + $0x1c] sm:$0xf]
    %v186 = vld [vmem:[#allocation7 + $0x20] sm:$0xf]
    %v187 = vld [vmem:[#allocation7 + $0x24] sm:$0xf]
    %v188 = vld [vmem:[#allocation7 + $0x28] sm:$0xf]
    %v189 = vld [vmem:[#allocation7 + $0x2c] sm:$0xf]
    %v190 = vld [vmem:[#allocation7 + $0x30] sm:$0xf]
    %v191 = vld [vmem:[#allocation7 + $0x34] sm:$0xf]
    %v192 = vld [vmem:[#allocation7 + $0x38] sm:$0xf]
    %v193 = vld [vmem:[#allocation7 + $0x3c] sm:$0xf]
    %v194 = vld [vmem:[%s4] sm:$0x1]
    %v196 = vlaneseq
    %v197 = vshrl.u32 %v196, 7
    %v198 = vsub.s32 0, %v197
    %v199 = vrot.slane %v194, %v198
    %v217 = vunpack.c.l.b16 %v178
    %v218 = vunpack.c.l.b16 %v179
    %v219 = vunpack.c.l.b16 %v180
    %v220 = vunpack.c.l.b16 %v181
    %v221 = vunpack.c.l.b16 %v182
    %v222 = vunpack.c.l.b16 %v183
    %v223 = vunpack.c.l.b16 %v184
    %v224 = vunpack.c.l.b16 %v185
    %v225 = vunpack.c.l.b16 %v186
    %v226 = vunpack.c.l.b16 %v187
    %v227 = vunpack.c.l.b16 %v188
    %v228 = vunpack.c.l.b16 %v189
    %v229 = vunpack.c.l.b16 %v190
    %v230 = vunpack.c.l.b16 %v191
    %v231 = vunpack.c.l.b16 %v192
    %v232 = vunpack.c.l.b16 %v193
    %v233 = vpack.c.b16 %v218, %v217
    %v234 = vpack.c.b16 %v220, %v219
    %v235 = vpack.c.b16 %v222, %v221
    %v236 = vpack.c.b16 %v224, %v223
    %v237 = vpack.c.b16 %v226, %v225
    %v238 = vpack.c.b16 %v228, %v227
    %v239 = vpack.c.b16 %v230, %v229
    %v240 = vpack.c.b16 %v232, %v231
    %249 = vmatprep.subr.bf16.mxu0 0
    %250 = vmatpush1.bf16.msra.mxu0 %v240
    %251 = vmatprep.subr.bf16.mxu0 0
    %252 = vmatpush1.bf16.msra.mxu0 %v239
    %253 = vmatprep.subr.bf16.mxu0 0
    %254 = vmatpush1.bf16.msra.mxu0 %v238
    %255 = vmatprep.subr.bf16.mxu0 0
    %256 = vmatpush1.bf16.msra.mxu0 %v237
    %257 = vmatprep.subr.bf16.mxu0 0
    %258 = vmatpush1.bf16.msra.mxu0 %v236
    %259 = vmatprep.subr.bf16.mxu0 0
    %260 = vmatpush1.bf16.msra.mxu0 %v235
    %261 = vmatprep.subr.bf16.mxu0 0
    %262 = vmatpush1.bf16.msra.mxu0 %v234
    %263 = vmatprep.subr.bf16.mxu0 0
    %264 = vmatpush1.bf16.msra.mxu0 %v233
    %265 = vmatprep.subr.bf16.mxu0 0
    %266 = vmatpush2.bf16.msra.mxu0 0
    %267 = vmatprep.subr.bf16.mxu0 0
    %268 = vmatpush2.bf16.msra.mxu0 0
    %269 = vmatprep.subr.bf16.mxu0 0
    %270 = vmatpush2.bf16.msra.mxu0 0
    %271 = vmatprep.subr.bf16.mxu0 0
    %272 = vmatpush2.bf16.msra.mxu0 0
    %273 = vmatprep.subr.bf16.mxu0 0
    %274 = vmatpush2.bf16.msra.mxu0 0
    %275 = vmatprep.subr.bf16.mxu0 0
    %276 = vmatpush2.bf16.msra.mxu0 0
    %277 = vmatprep.subr.bf16.mxu0 0
    %278 = vmatpush2.bf16.msra.mxu0 0
    %279 = vmatprep.subr.bf16.mxu0 0
    %280 = vmatpush2.bf16.msra.mxu0 0
    %281 = vmatprep.mubr.bf16.mxu0 0
    %282 = vmatmul.mubr.bf16.gmra.mxu0 %v65
    %v283 = vpop.f32.mrf.mxu0
    %v284 = vadd.f32 %v199, %v283
    %v285 = vpop.f32.mrf.mxu0
    %v286 = vpop.f32.mrf.mxu0
    %v287 = vadd.f32 %v199, %v286
    %v288 = vpop.f32.mrf.mxu0
    %289 = vdwg.mxu0
    %v290 = vsub.f32 0.0, %v284
    %v291 = vsub.f32 0.0, %v287
    %v292 = vmul.f32 %v290, 1.442695
    %v293 = vpow.pop %v292
    %v294 = vmul.f32 %v291, 1.442695
    %v295 = vpow.pop %v294
    %v296 = vadd.f32 %v293, 1.0
    %v297 = vadd.f32 %v295, 1.0
    %v298 = vrcp.pop %v296
    %v299 = vrcp.pop %v297
    %v300 = vmul.f32 %v284, %v298
    %v301 = vmul.f32 %v287, %v299
    %v302 = vmul.f32 %v172, %v300
    %v303 = vmul.f32 %v175, %v301
    %304 = vst [vmem:[#allocation8] sm:$0xff] %v302
    %305 = vst [vmem:[#allocation8 + $0x8] sm:$0xff] %v303
    // Predicated region
    $region34: #{tpu_custom_call.1} parent=1 // pred_check
      _
    $region35: #{tpu_custom_call.1} parent=1 // pred_check_branch
      %307 = sbr.rel (0) target = $region37
    $region36: #{tpu_custom_call.1} parent=1 // pred_region
      %s309 = ssub.s32 256, 256
      %310 = vsyncadd [#allocation4], %s309
      %s311 = sshll.u32 [#allocation8], 4
      %s312 = int_to_ptr.vmem [resolvable:$true] %s311
      %317 = dma.vmem_to_hbm [thread:$0]  %s312, 256, %s5, [#allocation4], 128, 128, 8
    $region37: #{tpu_custom_call.1} parent=1 // pred_fallthru
      _
    // Predicated region
    $region38: #{tpu_custom_call.1} parent=1 // pred_check
      _
    $region39: #{tpu_custom_call.1} parent=1 // pred_check_branch
      %319 = sbr.rel (0) target = $region41
    $region40: #{tpu_custom_call.1} parent=1 // pred_region
      %320 = dma.done [#allocation4], 256
    $region41: #{tpu_custom_call.1} parent=1 // pred_fallthru
      _
    %321 = vsyncpa [#allocation3], 1
    %322 = vsyncpa [#allocation6], 1
    %323 = vsyncpa [#allocation4], 1

</llo_original>
